<compile_context>
chip_gen: v6e
topology: v6e:2x2x1
jax: 0.10.0
libtpu: 0.0.40
codegen_flags: <defaults>
</compile_context>

<pallas_src>
import jax
import jax.numpy as jnp
from jax.experimental import pallas as pl
from jax.experimental.pallas import tpu as pltpu


def _round_up(n: int, m: int) -> int:
    return ((n + m - 1) // m) * m


def _pick_tile(dim: int, cap: int, quantum: int) -> int:
    """Largest quantum-aligned divisor of `dim` that is <= cap, else full dim."""
    if dim <= cap:
        return dim
    t = cap - (cap % quantum)
    while t >= quantum:
        if dim % t == 0:
            return t
        t -= quantum
    return dim  # full-extent block is always layout-legal


def lora_linear_kernel(x_ref, wb_ref, bias_ref, down_ref, b_ref, o_ref):
    """One (batch-tile, d_out-tile) output block, reducing over d_in tiles.

    The output block is resident across the K axis, so it doubles as the f32
    accumulator.  At k == 0 it is initialized with bias + the LoRA
    up-projection (alpha/rank already folded into B host-side).
    """
    k = pl.program_id(2)

    @pl.when(k == 0)
    def _init():
        up = jnp.dot(down_ref[...], b_ref[...],
                     preferred_element_type=jnp.float32)          # (tb, tn) f32
        o_ref[...] = bias_ref[...] + up

    # Frozen base model partial product:  x_k @ W_base[k, j]
    o_ref[...] += jnp.dot(x_ref[...], wb_ref[...],
                          preferred_element_type=jnp.float32)     # (tb, tn) f32


def prepare_lora_linear_params(w_base, bias, lora_a, lora_b, alpha, rank):
    """One-time host-side prep for the frozen base weight + LoRA adapter.

    The base model is frozen, so cache the result of this across forward calls
    instead of re-casting the weights in front of a memory-bound kernel.
    """
    wb_bf = w_base.astype(jnp.bfloat16)                      # (d_in, d_out)
    a_bf = lora_a.astype(jnp.bfloat16)                       # (d_in, r)
    b_bf = (lora_b * (alpha / rank)).astype(jnp.bfloat16)    # fold LoRA scale
    bias2d = bias.reshape(1, -1).astype(jnp.float32)         # (1, d_out)
    return wb_bf, bias2d, a_bf, b_bf


def advanced_lora_forward(x, params, *, tb=None, tn=None, tk=None):
    """x: (B, d_in) f32;  params from prepare_lora_linear_params()."""
    wb_bf, bias2d, a_bf, b_bf = params
    B, d_in = x.shape
    d_in_w, d_out = wb_bf.shape
    r = a_bf.shape[1]
    assert d_in_w == d_in

    # MXU/HBM-roofline friendly tile defaults, clamped to the problem size.
    if tn is None:
        tn = _pick_tile(d_out, 512, 128)
    if tk is None:
        tk = _pick_tile(d_in, 512, 128)
    assert d_out % tn == 0, "d_out must be a multiple of the N tile"
    assert d_in % tk == 0, "d_in must be a multiple of the K tile"

    # Batch tile: bigger is better (W_base is re-streamed once per batch tile).
    if tb is None:
        tb = min(_round_up(B, 16), 512)
    tb = max(16, _round_up(tb, 16))          # bf16 sublane packing (16 rows)
    Bp = _round_up(B, tb)                    # pad batch so the grid covers it

    # Per-call activation prep (cheap; weights were prepped once above).
    x_bf = x.astype(jnp.bfloat16)
    if Bp != B:
        x_bf = jnp.pad(x_bf, ((0, Bp - B), (0, 0)))

    # LoRA down-projection precomputed here (negligible flops) so the hot
    # (i, j, k) loop is a pure streamed-weight GEMM.
    down_bf = jnp.dot(x_bf, a_bf,
                      preferred_element_type=jnp.float32).astype(jnp.bfloat16)

    grid = (Bp // tb, d_out // tn, d_in // tk)

    # Advisory cost estimate.
    flops = 2 * Bp * d_in * d_out + 2 * Bp * r * d_out
    bytes_accessed = (x_bf.size * 2 * (d_out // tn)
                      + wb_bf.size * 2 * (Bp // tb)
                      + down_bf.size * 2 * (d_out // tn)
                      + b_bf.size * 2 * (Bp // tb)
                      + bias2d.size * 4 * (Bp // tb)
                      + Bp * d_out * 4)

    # VMEM budget: double-buffered streamed tiles + resident f32 output block.
    vmem_need = 2 * (tb * tk * 2 + tk * tn * 2 + tn * 4
                     + tb * r * 2 + r * tn * 2 + tb * tn * 4)
    try:
        phys_vmem = getattr(pltpu.get_tpu_info(), "vmem_capacity_bytes",
                            64 * 1024 * 1024)
    except Exception:                                       # not on TPU / old API
        phys_vmem = 64 * 1024 * 1024                        # conservative (v7x)
    vmem_limit = int(min(max(2 * vmem_need, 8 * 1024 * 1024),
                         phys_vmem * 3 // 4))

    out = pl.pallas_call(
        lora_linear_kernel,
        out_shape=jax.ShapeDtypeStruct((Bp, d_out), jnp.float32),
        grid_spec=pltpu.PrefetchScalarGridSpec(
            num_scalar_prefetch=0,
            grid=grid,
            in_specs=[
                pl.BlockSpec((tb, tk), lambda i, j, k: (i, k)),   # x tile
                pl.BlockSpec((tk, tn), lambda i, j, k: (k, j)),   # W_base tile
                pl.BlockSpec((1, tn), lambda i, j, k: (0, j)),    # bias tile
                pl.BlockSpec((tb, r), lambda i, j, k: (i, 0)),    # LoRA-down tile
                pl.BlockSpec((r, tn), lambda i, j, k: (0, j)),    # LoRA B tile
            ],
            out_specs=pl.BlockSpec((tb, tn), lambda i, j, k: (i, j)),
        ),
        compiler_params=pltpu.CompilerParams(
            dimension_semantics=("parallel", "parallel", "arbitrary"),
            vmem_limit_bytes=vmem_limit,
        ),
        cost_estimate=pl.CostEstimate(
            flops=flops, transcendentals=0, bytes_accessed=bytes_accessed),
    )(x_bf, wb_bf, bias2d, down_bf, b_bf)

    return out[:B] if Bp != B else out


if __name__ == "__main__":
    # Small shapes consistent with a Linear base model + LoRA(rank=16).
    # B=30 is deliberately not a multiple of the batch tile to exercise padding.
    B, D_IN, D_OUT, RANK = 30, 256, 256, 16
    ALPHA = 32.0

    key = jax.random.PRNGKey(0)
    kx, kw, kb, ka, kbm = jax.random.split(key, 5)

    x = jax.random.normal(kx, (B, D_IN), dtype=jnp.float32)
    # Synthetic parameters, stored pre-transposed as (in, out).
    w_base = jax.random.normal(kw, (D_IN, D_OUT), dtype=jnp.float32) * 0.05
    bias = jax.random.normal(kb, (D_OUT,), dtype=jnp.float32) * 0.01
    lora_a = jax.random.normal(ka, (D_IN, RANK), dtype=jnp.float32) * 0.02
    lora_b = jax.random.normal(kbm, (RANK, D_OUT), dtype=jnp.float32) * 0.02

    # One-time prep of the frozen base weight + adapter (cached across calls).
    params = prepare_lora_linear_params(w_base, bias, lora_a, lora_b, ALPHA, RANK)

    # Explicit small tiles so the 3-D grid (2, 2, 2), padding, and the k==0
    # init path are all exercised even at demo shapes.
    out = advanced_lora_forward(x, params, tb=16, tn=128, tk=128)
    out = jax.block_until_ready(out)

    # Pure-JAX reference using the same bf16-quantized operands the kernel sees.
    x32 = x.astype(jnp.bfloat16).astype(jnp.float32)
    w32 = w_base.astype(jnp.bfloat16).astype(jnp.float32)
    a32 = lora_a.astype(jnp.bfloat16).astype(jnp.float32)
    b32 = (lora_b * (ALPHA / RANK)).astype(jnp.bfloat16).astype(jnp.float32)
    down32 = (x32 @ a32).astype(jnp.bfloat16).astype(jnp.float32)
    ref = x32 @ w32 + bias + down32 @ b32

    assert out.shape == (B, D_OUT)
    assert jnp.allclose(out, ref, atol=2e-2, rtol=2e-2), "mismatch vs reference"

    print("KERNEL_OK")
</pallas_src>

<mosaic_0001>
module attributes {stable_mosaic.version = 11 : i64} {
  func.func @lora_linear_kernel(%arg0: i32, %arg1: i32, %arg2: i32, %arg3: memref<16x128xbf16, #tpu.memory_space<vmem>>, %arg4: memref<128x128xbf16, #tpu.memory_space<vmem>>, %arg5: memref<1x128xf32, #tpu.memory_space<vmem>>, %arg6: memref<16x16xbf16, #tpu.memory_space<vmem>>, %arg7: memref<16x128xbf16, #tpu.memory_space<vmem>>, %arg8: memref<16x128xf32, #tpu.memory_space<vmem>>) attributes {dimension_semantics = [#tpu.dimension_semantics<parallel>, #tpu.dimension_semantics<parallel>, #tpu.dimension_semantics<arbitrary>], iteration_bounds = array<i64: 2, 2, 2>, scalar_prefetch = 0 : i64, scratch_operands = 0 : i64, tpu.core_type = #tpu.core_type<tc>, window_params = [{transform_indices = @transform_0, window_bounds = array<i64: 16, 128>}, {transform_indices = @transform_1, window_bounds = array<i64: 128, 128>}, {transform_indices = @transform_2, window_bounds = array<i64: 1, 128>}, {transform_indices = @transform_3, window_bounds = array<i64: 16, 16>}, {transform_indices = @transform_4, window_bounds = array<i64: 16, 128>}, {transform_indices = @transform_5, window_bounds = array<i64: 16, 128>}]} {
    %c0_i32 = arith.constant 0 : i32
    %0 = arith.cmpi eq, %arg2, %c0_i32 : i32
    %1 = arith.extui %0 : i1 to i32
    %c0_i32_0 = arith.constant 0 : i32
    %2 = arith.cmpi ne, %1, %c0_i32_0 : i32
    scf.if %2 {
      %c0_8 = arith.constant 0 : index
      %c0_9 = arith.constant 0 : index
      %9 = vector.load %arg6[%c0_8, %c0_9] : memref<16x16xbf16, #tpu.memory_space<vmem>>, vector<16x16xbf16>
      %c0_10 = arith.constant 0 : index
      %c0_11 = arith.constant 0 : index
      %10 = vector.load %arg7[%c0_10, %c0_11] : memref<16x128xbf16, #tpu.memory_space<vmem>>, vector<16x128xbf16>
      %cst_12 = arith.constant dense<0.000000e+00> : vector<16x128xf32>
      %11 = tpu.matmul %9, %10, %cst_12 {dimension_numbers = #tpu.dot_dimension_numbers<[1], [0], [0], [1], [0, 0, 1, 1], [], []>} : vector<16x16xbf16>, vector<16x128xbf16>, vector<16x128xf32> -> vector<16x128xf32>
      %c0_13 = arith.constant 0 : index
      %c0_14 = arith.constant 0 : index
      %12 = vector.load %arg5[%c0_13, %c0_14] : memref<1x128xf32, #tpu.memory_space<vmem>>, vector<1x128xf32>
      %13 = vector.broadcast %12 : vector<1x128xf32> to vector<16x128xf32>
      %14 = arith.addf %13, %11 : vector<16x128xf32>
      %c0_15 = arith.constant 0 : index
      %c0_16 = arith.constant 0 : index
      %15 = vector.load %arg8[%c0_15, %c0_16] : memref<16x128xf32, #tpu.memory_space<vmem>>, vector<16x128xf32>
      tpu.vector_store %arg8[%c0_15, %c0_16], %14 {strides = array<i32>} : memref<16x128xf32, #tpu.memory_space<vmem>>, vector<16x128xf32>,
    } else {
    }
    %c0 = arith.constant 0 : index
    %c0_1 = arith.constant 0 : index
    %3 = vector.load %arg8[%c0, %c0_1] : memref<16x128xf32, #tpu.memory_space<vmem>>, vector<16x128xf32>
    %c0_2 = arith.constant 0 : index
    %c0_3 = arith.constant 0 : index
    %4 = vector.load %arg3[%c0_2, %c0_3] : memref<16x128xbf16, #tpu.memory_space<vmem>>, vector<16x128xbf16>
    %c0_4 = arith.constant 0 : index
    %c0_5 = arith.constant 0 : index
    %5 = vector.load %arg4[%c0_4, %c0_5] : memref<128x128xbf16, #tpu.memory_space<vmem>>, vector<128x128xbf16>
    %cst = arith.constant dense<0.000000e+00> : vector<16x128xf32>
    %6 = tpu.matmul %4, %5, %cst {dimension_numbers = #tpu.dot_dimension_numbers<[1], [0], [0], [1], [0, 0, 1, 1], [], []>} : vector<16x128xbf16>, vector<128x128xbf16>, vector<16x128xf32> -> vector<16x128xf32>
    %7 = arith.addf %3, %6 : vector<16x128xf32>
    %c0_6 = arith.constant 0 : index
    %c0_7 = arith.constant 0 : index
    %8 = vector.load %arg8[%c0_6, %c0_7] : memref<16x128xf32, #tpu.memory_space<vmem>>, vector<16x128xf32>
    tpu.vector_store %arg8[%c0_6, %c0_7], %7 {strides = array<i32>} : memref<16x128xf32, #tpu.memory_space<vmem>>, vector<16x128xf32>,
    return
  }
  func.func @transform_0(%arg0: i32, %arg1: i32, %arg2: i32) -> (i32, i32) {
    %c0_i32 = arith.constant 0 : i32
    return %arg0, %arg2 : i32, i32
  }
  func.func @transform_1(%arg0: i32, %arg1: i32, %arg2: i32) -> (i32, i32) {
    %c0_i32 = arith.constant 0 : i32
    return %arg2, %arg1 : i32, i32
  }
  func.func @transform_2(%arg0: i32, %arg1: i32, %arg2: i32) -> (i32, i32) {
    %c0_i32 = arith.constant 0 : i32
    %c0_i32_0 = arith.constant 0 : i32
    return %c0_i32, %arg1 : i32, i32
  }
  func.func @transform_3(%arg0: i32, %arg1: i32, %arg2: i32) -> (i32, i32) {
    %c0_i32 = arith.constant 0 : i32
    %c0_i32_0 = arith.constant 0 : i32
    return %arg0, %c0_i32 : i32, i32
  }
  func.func @transform_4(%arg0: i32, %arg1: i32, %arg2: i32) -> (i32, i32) {
    %c0_i32 = arith.constant 0 : i32
    %c0_i32_0 = arith.constant 0 : i32
    return %c0_i32, %arg1 : i32, i32
  }
  func.func @transform_5(%arg0: i32, %arg1: i32, %arg2: i32) -> (i32, i32) {
    %c0_i32 = arith.constant 0 : i32
    return %arg0, %arg1 : i32, i32
  }
}

</mosaic_0001>

<llo_original>
// kernel: tpu_custom_call.1
$region0: #{tpu_custom_call.1}
  #allocation0 [shape = 'u32[]', space=smem, size = 0x4, offset = 0x4, fixed_abs, tag = 'smem constant byte address 0x4 - core index']
  #allocation1 [shape = 'u32[144,128]{1,0:T(1,128)}', space=vmem, size = 0x12000, scoped, tag = 'internal scratch']
  %s0 = inlined_call_operand.hbm [shape: bf16[32,256], index: 0, kind: input, shape index: {}]
  %s1 = inlined_call_operand.hbm [shape: bf16[256,256], index: 1, kind: input, shape index: {}]
  %s2 = inlined_call_operand.vmem [shape: f32[1,256], index: 2, kind: input, shape index: {}]
  %s3 = inlined_call_operand.vmem [shape: bf16[32,16], index: 3, kind: input, shape index: {}]
  %s4 = inlined_call_operand.vmem [shape: bf16[16,256], index: 4, kind: input, shape index: {}]
  %s5 = inlined_call_operand.hbm [shape: f32[32,256], index: 5, kind: output, shape index: {}]
  %s6 = sld [smem:[#allocation0]]
  $region106: #{tpu_custom_call.1} parent=0
    _
  %s8 = ssub.s32 1, %s6
  %s9 = scalar_select 0, %s8, %s6
  $region1: #{tpu_custom_call.1} parent=0
    #allocation2 [shape = 'u8[8192]{0}', space=vmem, size = 0x2000, scoped, tag = 'input window, operand 0']
    #allocation3 [shape = 's32[2]{0}', space=sflag, size = 0x8, scoped, tag = 'scoped memory for tpu_custom_call.1']
    #allocation4 [shape = 's32[2]{0}', space=sflag, size = 0x8, scoped, tag = 'scoped memory for tpu_custom_call.1']
    #allocation5 [shape = 'u8[65536]{0}', space=vmem, size = 0x10000, scoped, tag = 'input window, operand 1']
    #allocation6 [shape = 's32[2]{0}', space=sflag, size = 0x8, scoped, tag = 'scoped memory for tpu_custom_call.1']
    #allocation7 [shape = 'u8[8192]{0}', space=vmem, size = 0x2000, scoped, tag = 'input window, operand 4']
    #allocation8 [shape = 'u8[16384]{0}', space=vmem, size = 0x4000, scoped, tag = 'output window, operand 0']
    %10 = vsyncpa [#allocation3], 0
    %s11 = scalar_lea.sflag [#allocation3], 1
    %12 = vsyncpa %s11, 0
    %13 = vsyncpa [#allocation6], 0
    %s14 = scalar_lea.sflag [#allocation6], 1
    %15 = vsyncpa %s14, 0
    %16 = vsyncpa [#allocation4], 0
    %s17 = scalar_lea.sflag [#allocation4], 1
    %18 = vsyncpa %s17, 0
    loop: start=0, step=1, limit=10
    $region2: #{tpu_custom_call.1} parent=1 // loop_pre_header
      _
    $region3: #{tpu_custom_call.1} parent=1 // loop_header
      %s20 = sphi 0, %s24
      %p21 = scmp.ge.s32.totalorder %s20, 10
      %s27 = sphi 0, %s46
      %s28 = sphi 0, %s42
      %s29 = sphi 0, %s38
      %s30 = sphi 0, %s27
      %s31 = sphi 0, %s28
      %s32 = sphi 0, %s29
      %s33 = sphi 0, %s30
      %s34 = sphi 0, %s31
      %s35 = sphi 0, %s32
      %s51 = sphi 0, %s53
      %s54 = sphi 0, %s51
      %s55 = sphi 0, %s54
      %s71 = sphi 0, %s55
      %s79 = sphi 0, %s81
      %s82 = sphi 0, %s79
      %s83 = sphi 0, %s82
      %s99 = sphi 0, %s83
      %s105 = sphi 0, %s107
      %s108 = sphi 0, %s105
      %s109 = sphi 0, %s108
      %s125 = sphi 0, %s109
      %s131 = sphi 0, %s133
      %s134 = sphi 0, %s131
      %s135 = sphi 0, %s134
      %s151 = sphi 0, %s135
      %s157 = sphi 0, %s159
      %s160 = sphi 0, %s157
      %s161 = sphi 0, %s160
      %s177 = sphi 0, %s161
      %s185 = sphi 0, %s187
      %s188 = sphi 0, %s185
      %s189 = sphi 0, %s188
      %s205 = sphi 0, %s189
    $region4: #{tpu_custom_call.1} parent=1 // loop_header_branch
      %23 = sbr.rel (%p21) target = $region8
    $region5: #{tpu_custom_call.1} parent=1 // loop_body
      %s25 = ssub.s32 %s20, 1
      %s26 = ssub.s32 %s20, 2
      %s36 = sadd.s32 1, %s29
      %p37 = scmp.ge.s32.totalorder %s36, 2
      %s38 = scalar_select %p37, 0, %s36
      %s39 = sadd.s32 1, %s28
      %s40 = scalar_select %p37, %s39, %s28
      %p41 = scmp.ge.s32.totalorder %s40, 2
      %s42 = scalar_select %p41, 0, %s40
      %s43 = sadd.s32 1, %s27
      %s44 = scalar_select %p41, %s43, %s27
      %p45 = scmp.ge.s32.totalorder %s44, 2
      %s46 = scalar_select %p45, 0, %s44
      %s47 = ssub.s32 %s27, %s46
      %s48 = ssub.s32 %s29, %s38
      %s49 = sor.u32 %s47, %s48
      %p50 = scmp.eq.s32.totalorder %s49, 0
      %s52 = sadd.s32 %s51, 1
      %s53 = scalar_select %p50, %s51, %s52
      %p56 = pneg %p50
      %p57 = scmp.eq.s32.totalorder %s20, 7
      %p58 = por %p56, %p57
      %p59 = scmp.ne.s32.totalorder %s51, %s54
      %p60 = scmp.eq.s32.totalorder %s20, 0
      %p61 = por %p59, %p60
      %p62 = scmp.ne.s32.totalorder %s51, %s54
      %p63 = scmp.eq.s32.totalorder %s25, 7
      %p64 = por %p62, %p63
      %p65 = scmp.ne.s32.totalorder %s54, %s55
      %p66 = scmp.eq.s32.totalorder %s25, 0
      %p67 = por %p65, %p66
      %p68 = scmp.ne.s32.totalorder %s54, %s55
      %p69 = scmp.eq.s32.totalorder %s26, 7
      %p70 = por %p68, %p69
      %p72 = scmp.ne.s32.totalorder %s55, %s71
      %p73 = scmp.eq.s32.totalorder %s26, 0
      %p74 = por %p72, %p73
      %s75 = ssub.s32 %s29, %s38
      %s76 = ssub.s32 %s28, %s42
      %s77 = sor.u32 %s75, %s76
      %p78 = scmp.eq.s32.totalorder %s77, 0
      %s80 = sadd.s32 %s79, 1
      %s81 = scalar_select %p78, %s79, %s80
      %p84 = pneg %p78
      %p85 = scmp.eq.s32.totalorder %s20, 7
      %p86 = por %p84, %p85
      %p87 = scmp.ne.s32.totalorder %s79, %s82
      %p88 = scmp.eq.s32.totalorder %s20, 0
      %p89 = por %p87, %p88
      %p90 = scmp.ne.s32.totalorder %s79, %s82
      %p91 = scmp.eq.s32.totalorder %s25, 7
      %p92 = por %p90, %p91
      %p93 = scmp.ne.s32.totalorder %s82, %s83
      %p94 = scmp.eq.s32.totalorder %s25, 0
      %p95 = por %p93, %p94
      %p96 = scmp.ne.s32.totalorder %s82, %s83
      %p97 = scmp.eq.s32.totalorder %s26, 7
      %p98 = por %p96, %p97
      %p100 = scmp.ne.s32.totalorder %s83, %s99
      %p101 = scmp.eq.s32.totalorder %s26, 0
      %p102 = por %p100, %p101
      %s103 = ssub.s32 %s28, %s42
      %p104 = scmp.eq.s32.totalorder %s103, 0
      %s106 = sadd.s32 %s105, 1
      %s107 = scalar_select %p104, %s105, %s106
      %p110 = pneg %p104
      %p111 = scmp.eq.s32.totalorder %s20, 7
      %p112 = por %p110, %p111
      %p113 = scmp.ne.s32.totalorder %s105, %s108
      %p114 = scmp.eq.s32.totalorder %s20, 0
      %p115 = por %p113, %p114
      %p116 = scmp.ne.s32.totalorder %s105, %s108
      %p117 = scmp.eq.s32.totalorder %s25, 7
      %p118 = por %p116, %p117
      %p119 = scmp.ne.s32.totalorder %s108, %s109
      %p120 = scmp.eq.s32.totalorder %s25, 0
      %p121 = por %p119, %p120
      %p122 = scmp.ne.s32.totalorder %s108, %s109
      %p123 = scmp.eq.s32.totalorder %s26, 7
      %p124 = por %p122, %p123
      %p126 = scmp.ne.s32.totalorder %s109, %s125
      %p127 = scmp.eq.s32.totalorder %s26, 0
      %p128 = por %p126, %p127
      %s129 = ssub.s32 %s27, %s46
      %p130 = scmp.eq.s32.totalorder %s129, 0
      %s132 = sadd.s32 %s131, 1
      %s133 = scalar_select %p130, %s131, %s132
      %p136 = pneg %p130
      %p137 = scmp.eq.s32.totalorder %s20, 7
      %p138 = por %p136, %p137
      %p139 = scmp.ne.s32.totalorder %s131, %s134
      %p140 = scmp.eq.s32.totalorder %s20, 0
      %p141 = por %p139, %p140
      %p142 = scmp.ne.s32.totalorder %s131, %s134
      %p143 = scmp.eq.s32.totalorder %s25, 7
      %p144 = por %p142, %p143
      %p145 = scmp.ne.s32.totalorder %s134, %s135
      %p146 = scmp.eq.s32.totalorder %s25, 0
      %p147 = por %p145, %p146
      %p148 = scmp.ne.s32.totalorder %s134, %s135
      %p149 = scmp.eq.s32.totalorder %s26, 7
      %p150 = por %p148, %p149
      %p152 = scmp.ne.s32.totalorder %s135, %s151
      %p153 = scmp.eq.s32.totalorder %s26, 0
      %p154 = por %p152, %p153
      %s155 = ssub.s32 %s28, %s42
      %p156 = scmp.eq.s32.totalorder %s155, 0
      %s158 = sadd.s32 %s157, 1
      %s159 = scalar_select %p156, %s157, %s158
      %p162 = pneg %p156
      %p163 = scmp.eq.s32.totalorder %s20, 7
      %p164 = por %p162, %p163
      %p165 = scmp.ne.s32.totalorder %s157, %s160
      %p166 = scmp.eq.s32.totalorder %s20, 0
      %p167 = por %p165, %p166
      %p168 = scmp.ne.s32.totalorder %s157, %s160
      %p169 = scmp.eq.s32.totalorder %s25, 7
      %p170 = por %p168, %p169
      %p171 = scmp.ne.s32.totalorder %s160, %s161
      %p172 = scmp.eq.s32.totalorder %s25, 0
      %p173 = por %p171, %p172
      %p174 = scmp.ne.s32.totalorder %s160, %s161
      %p175 = scmp.eq.s32.totalorder %s26, 7
      %p176 = por %p174, %p175
      %p178 = scmp.ne.s32.totalorder %s161, %s177
      %p179 = scmp.eq.s32.totalorder %s26, 0
      %p180 = por %p178, %p179
      %s181 = ssub.s32 %s27, %s46
      %s182 = ssub.s32 %s28, %s42
      %s183 = sor.u32 %s181, %s182
      %p184 = scmp.eq.s32.totalorder %s183, 0
      %s186 = sadd.s32 %s185, 1
      %s187 = scalar_select %p184, %s185, %s186
      %p190 = pneg %p184
      %p191 = scmp.eq.s32.totalorder %s20, 7
      %p192 = por %p190, %p191
      %p193 = scmp.ne.s32.totalorder %s185, %s188
      %p194 = scmp.eq.s32.totalorder %s20, 0
      %p195 = por %p193, %p194
      %p196 = scmp.ne.s32.totalorder %s185, %s188
      %p197 = scmp.eq.s32.totalorder %s25, 7
      %p198 = por %p196, %p197
      %p199 = scmp.ne.s32.totalorder %s188, %s189
      %p200 = scmp.eq.s32.totalorder %s25, 0
      %p201 = por %p199, %p200
      %p202 = scmp.ne.s32.totalorder %s188, %s189
      %p203 = scmp.eq.s32.totalorder %s26, 7
      %p204 = por %p202, %p203
      %p206 = scmp.ne.s32.totalorder %s189, %s205
      %p207 = scmp.eq.s32.totalorder %s26, 0
      %p208 = por %p206, %p207
      %p209 = scmp.le.s32.totalorder 1, %s20
      %p210 = scmp.lt.s32.totalorder %s20, 9
      %p211 = pnand %p209, %p210
      %p212 = pneg %p211
      // Predicated region
      $region9: #{tpu_custom_call.1} parent=5 // pred_check
        _
      $region10: #{tpu_custom_call.1} parent=5 // pred_check_branch
        %214 = sbr.rel (%p211) target = $region12
      $region11: #{tpu_custom_call.1} parent=5 // pred_region
        %s215 = ssub.s32 %s20, 1
      $region12: #{tpu_custom_call.1} parent=5 // pred_fallthru
        _
      %p216 = scmp.lt.s32.totalorder %s20, 8
      // Predicated region
      $region13: #{tpu_custom_call.1} parent=5 // pred_check
        %p217 = pneg %p216
      $region14: #{tpu_custom_call.1} parent=5 // pred_check_branch
        %219 = sbr.rel (%p217) target = $region16
      $region15: #{tpu_custom_call.1} parent=5 // pred_region
        // Predicated region
        $region17: #{tpu_custom_call.1} parent=15 // pred_check
          %p220 = pneg %p61
        $region18: #{tpu_custom_call.1} parent=15 // pred_check_branch
          %222 = sbr.rel (%p220) target = $region20
        $region19: #{tpu_custom_call.1} parent=15 // pred_region
          %s223 = sand.u32 %s51, 1
          %s224 = scalar_lea.sflag [#allocation3], %s223
          %s225 = sand.u32 %s51, 1
          %s226 = smul.addr %s225, 8
          %s227 = scalar_lea.vmem [#allocation2], %s226
          %s228 = smul.u32 2, %s27
          %s230 = ssub.s32 128, 128
          %231 = vsyncadd %s224, %s230
          %s232 = smul.addr %s228, 2
          %s233 = sadd.s32 %s29, %s232
          %s234 = smul.addr %s233, 64
          %s235 = scalar_lea.hbm %s0, %s234
          %s236 = sshll.u32 %s227, 4
          %s237 = int_to_ptr.vmem [resolvable:$true] %s236
          %242 = dma.hbm_to_vmem [thread:$0]  %s235, 128, %s237, %s224, 128, 64, 4
        $region20: #{tpu_custom_call.1} parent=15 // pred_fallthru
          _
        // Predicated region
        $region21: #{tpu_custom_call.1} parent=15 // pred_check
          %p243 = pneg %p89
        $region22: #{tpu_custom_call.1} parent=15 // pred_check_branch
          %245 = sbr.rel (%p243) target = $region24
        $region23: #{tpu_custom_call.1} parent=15 // pred_region
          %s246 = sand.u32 %s79, 1
          %s247 = scalar_lea.sflag [#allocation6], %s246
          %s248 = sand.u32 %s79, 1
          %s249 = smul.addr %s248, 64
          %s250 = scalar_lea.vmem [#allocation5], %s249
          %s251 = smul.u32 16, %s29
          %s253 = ssub.s32 1024, 1024
          %254 = vsyncadd %s247, %s253
          %s255 = smul.addr %s251, 2
          %s256 = sadd.s32 %s28, %s255
          %s257 = smul.addr %s256, 64
          %s258 = scalar_lea.hbm %s1, %s257
          %s259 = sshll.u32 %s250, 4
          %s260 = int_to_ptr.vmem [resolvable:$true] %s259
          %265 = dma.hbm_to_vmem [thread:$0]  %s258, 1024, %s260, %s247, 128, 64, 4
        $region24: #{tpu_custom_call.1} parent=15 // pred_fallthru
          _
        // Predicated region
        $region25: #{tpu_custom_call.1} parent=15 // pred_check
          %p266 = pneg %p115
        $region26: #{tpu_custom_call.1} parent=15 // pred_check_branch
          %268 = sbr.rel (%p266) target = $region28
        $region27: #{tpu_custom_call.1} parent=15 // pred_region
          %p269 = scmp.lt.s32.totalorder %s28, 1
          %s270 = scalar_select %p269, %s28, 1
          %s271 = scalar_lea.vmem %s2, %s270
        $region28: #{tpu_custom_call.1} parent=15 // pred_fallthru
          _
        // Predicated region
        $region29: #{tpu_custom_call.1} parent=15 // pred_check
          %p272 = pneg %p141
        $region30: #{tpu_custom_call.1} parent=15 // pred_check_branch
          %274 = sbr.rel (%p272) target = $region32
        $region31: #{tpu_custom_call.1} parent=15 // pred_region
          %s275 = smul.u32 2, %s27
          %p276 = scmp.lt.s32.totalorder %s275, 3
          %s277 = scalar_select %p276, %s275, 3
          %s278 = smul.addr %s277, 4
          %s279 = scalar_lea.vmem %s3, %s278
          %s280 = smul.u32 2, %s27
        $region32: #{tpu_custom_call.1} parent=15 // pred_fallthru
          _
        // Predicated region
        $region33: #{tpu_custom_call.1} parent=15 // pred_check
          %p281 = pneg %p167
        $region34: #{tpu_custom_call.1} parent=15 // pred_check_branch
          %283 = sbr.rel (%p281) target = $region36
        $region35: #{tpu_custom_call.1} parent=15 // pred_region
          %s284 = sand.u32 %s157, 1
          %s285 = sand.u32 %s157, 1
          %s286 = smul.addr %s285, 8
          %s287 = scalar_lea.vmem [#allocation7], %s286
          %s288 = smul.addr %s28, 4
          %s289 = scalar_lea.vmem %s4, %s288
          // Predicated region
          $region37: #{tpu_custom_call.1} parent=35 // pred_check
            _
          $region38: #{tpu_custom_call.1} parent=35 // pred_check_branch
            %291 = sbr.rel (0) target = $region40
          $region39: #{tpu_custom_call.1} parent=35 // pred_region
            // Predicated region
            $region41: #{tpu_custom_call.1} parent=39 // pred_check
              _
            $region42: #{tpu_custom_call.1} parent=39 // pred_check_branch
              %293 = sbr.rel target = $region44
            $region43: #{tpu_custom_call.1} parent=39 // pred_region
              // Predicated region
              $region56: #{tpu_custom_call.1} parent=43 // pred_check
                _
              $region57: #{tpu_custom_call.1} parent=43 // pred_check_branch
                %311 = sbr.rel (0) target = $region59
              $region58: #{tpu_custom_call.1} parent=43 // pred_region
                loop: start=0, step=1, limit=1
                $region60: #{tpu_custom_call.1} parent=58 // loop_pre_header
                  _
                $region61: #{tpu_custom_call.1} parent=58 // loop_header
                  %s313 = sphi 0, %s317
                  %p314 = scmp.ge.s32.totalorder %s313, 1
                  %s318 = sphi %s289, %s289
                  %s319 = sphi %s287, %s287
                $region62: #{tpu_custom_call.1} parent=58 // loop_header_branch
                  %316 = sbr.rel (%p314) target = $region66
                $region63: #{tpu_custom_call.1} parent=58 // loop_body
                  _
                $region64: #{tpu_custom_call.1} parent=58 // loop_footer
                  %s317 = sadd.s32 1, %s313
                $region65: #{tpu_custom_call.1} parent=58 // loop_footer_branch
                  %312 = sbr.rel target = $region61
                $region66: #{tpu_custom_call.1} parent=58 // loop_exit
                  _
                %s321 = ssub.s32 16, 1
                loop: start=0, step=1, limit=1
                $region67: #{tpu_custom_call.1} parent=58 // loop_pre_header
                  _
                $region68: #{tpu_custom_call.1} parent=58 // loop_header
                  %s323 = sphi 0, %s327
                  %p324 = scmp.ge.s32.totalorder %s323, 1
                  %s328 = sphi %s289, %s289
                  %s329 = sphi %s287, %s287
                $region69: #{tpu_custom_call.1} parent=58 // loop_header_branch
                  %326 = sbr.rel (%p324) target = $region73
                $region70: #{tpu_custom_call.1} parent=58 // loop_body
                  %v330 = vld [vmem:[%s328] sm:%s321]
                  %331 = vst [vmem:[%s329] sm:%s321] %v330
                  %v332 = vld [vmem:[%s328 + $0x8] sm:%s321]
                  %333 = vst [vmem:[%s329 + $0x4] sm:%s321] %v332
                $region71: #{tpu_custom_call.1} parent=58 // loop_footer
                  %s327 = sadd.s32 1, %s323
                $region72: #{tpu_custom_call.1} parent=58 // loop_footer_branch
                  %322 = sbr.rel target = $region68
                $region73: #{tpu_custom_call.1} parent=58 // loop_exit
                  _
              $region59: #{tpu_custom_call.1} parent=43 // pred_fallthru
                _
            $region44: #{tpu_custom_call.1} parent=39 // pred_fallthru
              _
            // Predicated region
            $region45: #{tpu_custom_call.1} parent=39 // pred_check
              _
            $region46: #{tpu_custom_call.1} parent=39 // pred_check_branch
              %295 = sbr.rel (0) target = $region48
            $region47: #{tpu_custom_call.1} parent=39 // pred_region
              %s297 = ssub.s32 16, 1
              loop: start=0, step=1, limit=1
              $region49: #{tpu_custom_call.1} parent=47 // loop_pre_header
                _
              $region50: #{tpu_custom_call.1} parent=47 // loop_header
                %s299 = sphi 0, %s303
                %p300 = scmp.ge.s32.totalorder %s299, 1
                %s304 = sphi %s289, %s289
                %s305 = sphi %s287, %s287
              $region51: #{tpu_custom_call.1} parent=47 // loop_header_branch
                %302 = sbr.rel (%p300) target = $region55
              $region52: #{tpu_custom_call.1} parent=47 // loop_body
                %v306 = vld [vmem:[%s304] sm:%s297]
                %307 = vst [vmem:[%s305] sm:%s297] %v306
                %v308 = vld [vmem:[%s304 + $0x8] sm:%s297]
                %309 = vst [vmem:[%s305 + $0x4] sm:%s297] %v308
              $region53: #{tpu_custom_call.1} parent=47 // loop_footer
                %s303 = sadd.s32 1, %s299
              $region54: #{tpu_custom_call.1} parent=47 // loop_footer_branch
                %298 = sbr.rel target = $region50
              $region55: #{tpu_custom_call.1} parent=47 // loop_exit
                _
            $region48: #{tpu_custom_call.1} parent=39 // pred_fallthru
              _
          $region40: #{tpu_custom_call.1} parent=35 // pred_fallthru
            _
          %334 = vnop
        $region36: #{tpu_custom_call.1} parent=15 // pred_fallthru
          _
      $region16: #{tpu_custom_call.1} parent=5 // pred_fallthru
        _
      %p335 = scmp.le.s32.totalorder 1, %s20
      %p336 = scmp.lt.s32.totalorder %s20, 9
      %p337 = pnand %p335, %p336
      %p338 = pneg %p337
      // Predicated region
      $region74: #{tpu_custom_call.1} parent=5 // pred_check
        _
      $region75: #{tpu_custom_call.1} parent=5 // pred_check_branch
        %340 = sbr.rel (%p337) target = $region77
      $region76: #{tpu_custom_call.1} parent=5 // pred_region
        %s341 = ssub.s32 %s20, 1
        %s342 = sand.u32 %s54, 1
        %s343 = scalar_lea.sflag [#allocation3], %s342
        %s344 = sand.u32 %s54, 1
        %s345 = smul.addr %s344, 8
        %s346 = scalar_lea.vmem [#allocation2], %s345
        // Predicated region
        $region78: #{tpu_custom_call.1} parent=76 // pred_check
          %p347 = pneg %p67
        $region79: #{tpu_custom_call.1} parent=76 // pred_check_branch
          %349 = sbr.rel (%p347) target = $region81
        $region80: #{tpu_custom_call.1} parent=76 // pred_region
          %350 = dma.done %s343, 128
        $region81: #{tpu_custom_call.1} parent=76 // pred_fallthru
          _
        %s351 = sand.u32 %s82, 1
        %s352 = scalar_lea.sflag [#allocation6], %s351
        %s353 = sand.u32 %s82, 1
        %s354 = smul.addr %s353, 64
        %s355 = scalar_lea.vmem [#allocation5], %s354
        // Predicated region
        $region82: #{tpu_custom_call.1} parent=76 // pred_check
          %p356 = pneg %p95
        $region83: #{tpu_custom_call.1} parent=76 // pred_check_branch
          %358 = sbr.rel (%p356) target = $region85
        $region84: #{tpu_custom_call.1} parent=76 // pred_region
          %359 = dma.done %s352, 1024
        $region85: #{tpu_custom_call.1} parent=76 // pred_fallthru
          _
        %s360 = sand.u32 %s160, 1
        %s361 = sand.u32 %s160, 1
        %s362 = smul.addr %s361, 8
        %s363 = scalar_lea.vmem [#allocation7], %s362
        // Predicated region
        $region86: #{tpu_custom_call.1} parent=76 // pred_check
          %p364 = pneg %p173
        $region87: #{tpu_custom_call.1} parent=76 // pred_check_branch
          %366 = sbr.rel (%p364) target = $region89
        $region88: #{tpu_custom_call.1} parent=76 // pred_region
          _
        $region89: #{tpu_custom_call.1} parent=76 // pred_fallthru
          _
        %s367 = sand.u32 %s54, 1
        %s368 = scalar_lea.sflag [#allocation3], %s367
        %s369 = sand.u32 %s54, 1
        %s370 = smul.addr %s369, 8
        %s371 = scalar_lea.vmem [#allocation2], %s370
        %p372 = pneg %p67
        %p373 = pneg %p64
        %s374 = sand.u32 %s82, 1
        %s375 = scalar_lea.sflag [#allocation6], %s374
        %s376 = sand.u32 %s82, 1
        %s377 = smul.addr %s376, 64
        %s378 = scalar_lea.vmem [#allocation5], %s377
        %p379 = pneg %p95
        %p380 = pneg %p92
        %p381 = scmp.lt.s32.totalorder %s31, 1
        %s382 = scalar_select %p381, %s31, 1
        %s383 = scalar_lea.vmem %s2, %s382
        %p384 = pneg %p121
        %p385 = pneg %p118
        %s386 = smul.u32 2, %s30
        %p387 = scmp.lt.s32.totalorder %s386, 3
        %s388 = scalar_select %p387, %s386, 3
        %s389 = smul.addr %s388, 4
        %s390 = scalar_lea.vmem %s3, %s389
        %p391 = pneg %p147
        %p392 = pneg %p144
        %s393 = sand.u32 %s160, 1
        %s394 = sand.u32 %s160, 1
        %s395 = smul.addr %s394, 8
        %s396 = scalar_lea.vmem [#allocation7], %s395
        %p397 = pneg %p173
        %p398 = pneg %p170
        %p399 = pneg %p201
        %p400 = pneg %p198
        %s401 = sand.u32 %s188, 1
        %s402 = scalar_lea.sflag [#allocation4], %s401
        %s403 = sand.u32 %s188, 1
        %s404 = smul.addr %s403, 16
        %s405 = scalar_lea.vmem [#allocation8], %s404
        %s406 = smul.u32 2, %s30
        %s407 = smul.u32 16, %s32
        %p408 = scmp.lt.s32.totalorder %s31, 1
        %s409 = scalar_select %p408, %s31, 1
        %s410 = scalar_lea.vmem %s2, %s409
        %s411 = smul.u32 2, %s30
        %p412 = scmp.lt.s32.totalorder %s411, 3
        %s413 = scalar_select %p412, %s411, 3
        %s414 = smul.addr %s413, 4
        %s415 = scalar_lea.vmem %s3, %s414
        %s416 = smul.u32 2, %s30
        %s417 = smul.u32 2, %s30
        %p419 = scmp.eq.s32.totalorder %s32, 0
        // Predicated region
        $region90: #{tpu_custom_call.1} parent=76 // pred_check
          %p420 = pneg %p419
        $region91: #{tpu_custom_call.1} parent=76 // pred_check_branch
          %422 = sbr.rel (%p420) target = $region93
        $region92: #{tpu_custom_call.1} parent=76 // pred_region
          %v423 = vld [vmem:[%s415] sm:$0xf]
          %v424 = vld [vmem:[%s415 + $0x4] sm:$0xf]
          %v425 = vld [vmem:[%s363] sm:$0xf]
          %v426 = vld [vmem:[%s363 + $0x4] sm:$0xf]
          %v429 = vunpack.c.l.b16 %v423
          %v430 = vunpack.c.l.b16 %v424
          %v431 = vpack.c.b16 %v430, %v429
          %v434 = vunpack.c.l.b16 %v425
          %v435 = vunpack.c.l.b16 %v426
          %v436 = vpack.c.b16 %v435, %v434
          %vm438 = vcmask 130048
          %v440 = vsel %vm438, %v431, 0
          %442 = vmatprep.subr.bf16.mxu0 0
          %443 = vmatpush1.bf16.msra.mxu0 0
          %444 = vmatprep.subr.bf16.mxu0 0
          %445 = vmatpush1.bf16.msra.mxu0 0
          %446 = vmatprep.subr.bf16.mxu0 0
          %447 = vmatpush1.bf16.msra.mxu0 0
          %448 = vmatprep.subr.bf16.mxu0 0
          %449 = vmatpush1.bf16.msra.mxu0 0
          %450 = vmatprep.subr.bf16.mxu0 0
          %451 = vmatpush1.bf16.msra.mxu0 0
          %452 = vmatprep.subr.bf16.mxu0 0
          %453 = vmatpush1.bf16.msra.mxu0 0
          %454 = vmatprep.subr.bf16.mxu0 0
          %455 = vmatpush1.bf16.msra.mxu0 0
          %456 = vmatprep.subr.bf16.mxu0 0
          %457 = vmatpush1.bf16.msra.mxu0 %v436
          %458 = vmatprep.subr.bf16.mxu0 0
          %459 = vmatpush2.bf16.msra.mxu0 0
          %460 = vmatprep.subr.bf16.mxu0 0
          %461 = vmatpush2.bf16.msra.mxu0 0
          %462 = vmatprep.subr.bf16.mxu0 0
          %463 = vmatpush2.bf16.msra.mxu0 0
          %464 = vmatprep.subr.bf16.mxu0 0
          %465 = vmatpush2.bf16.msra.mxu0 0
          %466 = vmatprep.subr.bf16.mxu0 0
          %467 = vmatpush2.bf16.msra.mxu0 0
          %468 = vmatprep.subr.bf16.mxu0 0
          %469 = vmatpush2.bf16.msra.mxu0 0
          %470 = vmatprep.subr.bf16.mxu0 0
          %471 = vmatpush2.bf16.msra.mxu0 0
          %472 = vmatprep.subr.bf16.mxu0 0
          %473 = vmatpush2.bf16.msra.mxu0 0
          %474 = vmatprep.mubr.bf16.mxu0 0
          %475 = vmatmul.mubr.bf16.gmra.mxu0 %v440
          %v476 = vpop.f32.mrf.mxu0
          %v477 = vadd.f32 0.0, %v476
          %v478 = vpop.f32.mrf.mxu0
          %v479 = vpop.f32.mrf.mxu0
          %v480 = vadd.f32 0.0, %v479
          %v481 = vpop.f32.mrf.mxu0
          %482 = vdwg.mxu0
          %v483 = vld [vmem:[%s410] sm:$0x1]
          %v485 = vlaneseq
          %v486 = vshrl.u32 %v485, 7
          %v487 = vsub.s32 0, %v486
          %v488 = vrot.slane %v483, %v487
          %v490 = vadd.f32 %v488, %v477
          %v491 = vadd.f32 %v488, %v480
          %492 = vst [vmem:[%s405] sm:$0xff] %v490
          %493 = vst [vmem:[%s405 + $0x8] sm:$0xff] %v491
        $region93: #{tpu_custom_call.1} parent=76 // pred_fallthru
          _
        %v494 = vld [vmem:[%s405] sm:$0xff]
        %v495 = vld [vmem:[%s405 + $0x8] sm:$0xff]
        %v496 = vld [vmem:[%s346] sm:$0xf]
        %v497 = vld [vmem:[%s346 + $0x4] sm:$0xf]
        %v498 = vld [vmem:[%s355] sm:$0xf]
        %v499 = vld [vmem:[%s355 + $0x4] sm:$0xf]
        %v500 = vld [vmem:[%s355 + $0x8] sm:$0xf]
        %v501 = vld [vmem:[%s355 + $0xc] sm:$0xf]
        %v502 = vld [vmem:[%s355 + $0x10] sm:$0xf]
        %v503 = vld [vmem:[%s355 + $0x14] sm:$0xf]
        %v504 = vld [vmem:[%s355 + $0x18] sm:$0xf]
        %v505 = vld [vmem:[%s355 + $0x1c] sm:$0xf]
        %v506 = vld [vmem:[%s355 + $0x20] sm:$0xf]
        %v507 = vld [vmem:[%s355 + $0x24] sm:$0xf]
        %v508 = vld [vmem:[%s355 + $0x28] sm:$0xf]
        %v509 = vld [vmem:[%s355 + $0x2c] sm:$0xf]
        %v510 = vld [vmem:[%s355 + $0x30] sm:$0xf]
        %v511 = vld [vmem:[%s355 + $0x34] sm:$0xf]
        %v512 = vld [vmem:[%s355 + $0x38] sm:$0xf]
        %v513 = vld [vmem:[%s355 + $0x3c] sm:$0xf]
        %v516 = vunpack.c.l.b16 %v496
        %v517 = vunpack.c.l.b16 %v497
        %v518 = vpack.c.b16 %v517, %v516
        %v536 = vunpack.c.l.b16 %v498
        %v537 = vunpack.c.l.b16 %v499
        %v538 = vunpack.c.l.b16 %v500
        %v539 = vunpack.c.l.b16 %v501
        %v540 = vunpack.c.l.b16 %v502
        %v541 = vunpack.c.l.b16 %v503
        %v542 = vunpack.c.l.b16 %v504
        %v543 = vunpack.c.l.b16 %v505
        %v544 = vunpack.c.l.b16 %v506
        %v545 = vunpack.c.l.b16 %v507
        %v546 = vunpack.c.l.b16 %v508
        %v547 = vunpack.c.l.b16 %v509
        %v548 = vunpack.c.l.b16 %v510
        %v549 = vunpack.c.l.b16 %v511
        %v550 = vunpack.c.l.b16 %v512
        %v551 = vunpack.c.l.b16 %v513
        %v552 = vpack.c.b16 %v537, %v536
        %v553 = vpack.c.b16 %v539, %v538
        %v554 = vpack.c.b16 %v541, %v540
        %v555 = vpack.c.b16 %v543, %v542
        %v556 = vpack.c.b16 %v545, %v544
        %v557 = vpack.c.b16 %v547, %v546
        %v558 = vpack.c.b16 %v549, %v548
        %v559 = vpack.c.b16 %v551, %v550
        %568 = vmatprep.subr.bf16.mxu0 0
        %569 = vmatpush1.bf16.msra.mxu0 %v559
        %570 = vmatprep.subr.bf16.mxu0 0
        %571 = vmatpush1.bf16.msra.mxu0 %v558
        %572 = vmatprep.subr.bf16.mxu0 0
        %573 = vmatpush1.bf16.msra.mxu0 %v557
        %574 = vmatprep.subr.bf16.mxu0 0
        %575 = vmatpush1.bf16.msra.mxu0 %v556
        %576 = vmatprep.subr.bf16.mxu0 0
        %577 = vmatpush1.bf16.msra.mxu0 %v555
        %578 = vmatprep.subr.bf16.mxu0 0
        %579 = vmatpush1.bf16.msra.mxu0 %v554
        %580 = vmatprep.subr.bf16.mxu0 0
        %581 = vmatpush1.bf16.msra.mxu0 %v553
        %582 = vmatprep.subr.bf16.mxu0 0
        %583 = vmatpush1.bf16.msra.mxu0 %v552
        %584 = vmatprep.subr.bf16.mxu0 0
        %585 = vmatpush2.bf16.msra.mxu0 0
        %586 = vmatprep.subr.bf16.mxu0 0
        %587 = vmatpush2.bf16.msra.mxu0 0
        %588 = vmatprep.subr.bf16.mxu0 0
        %589 = vmatpush2.bf16.msra.mxu0 0
        %590 = vmatprep.subr.bf16.mxu0 0
        %591 = vmatpush2.bf16.msra.mxu0 0
        %592 = vmatprep.subr.bf16.mxu0 0
        %593 = vmatpush2.bf16.msra.mxu0 0
        %594 = vmatprep.subr.bf16.mxu0 0
        %595 = vmatpush2.bf16.msra.mxu0 0
        %596 = vmatprep.subr.bf16.mxu0 0
        %597 = vmatpush2.bf16.msra.mxu0 0
        %598 = vmatprep.subr.bf16.mxu0 0
        %599 = vmatpush2.bf16.msra.mxu0 0
        %600 = vmatprep.mubr.bf16.mxu0 0
        %601 = vmatmul.mubr.bf16.gmra.mxu0 %v518
        %v602 = vpop.f32.mrf.mxu0
        %v603 = vadd.f32 0.0, %v602
        %v604 = vpop.f32.mrf.mxu0
        %v605 = vpop.f32.mrf.mxu0
        %v606 = vadd.f32 0.0, %v605
        %v607 = vpop.f32.mrf.mxu0
        %608 = vdwg.mxu0
        %v609 = vadd.f32 %v494, %v603
        %v610 = vadd.f32 %v495, %v606
        %611 = vst [vmem:[%s405] sm:$0xff] %v609
        %612 = vst [vmem:[%s405 + $0x8] sm:$0xff] %v610
        %s613 = sand.u32 %s188, 1
        %s614 = scalar_lea.sflag [#allocation4], %s613
        %s615 = sand.u32 %s188, 1
        %s616 = smul.addr %s615, 16
        %s617 = scalar_lea.vmem [#allocation8], %s616
        // Predicated region
        $region94: #{tpu_custom_call.1} parent=76 // pred_check
          %p618 = pneg %p198
        $region95: #{tpu_custom_call.1} parent=76 // pred_check_branch
          %620 = sbr.rel (%p618) target = $region97
        $region96: #{tpu_custom_call.1} parent=76 // pred_region
          %s621 = smul.u32 2, %s30
          %s623 = ssub.s32 256, 256
          %624 = vsyncadd %s614, %s623
          %s625 = smul.addr %s621, 2
          %s626 = sadd.s32 %s31, %s625
          %s627 = smul.addr %s626, 128
          %s628 = scalar_lea.hbm %s5, %s627
          %s629 = sshll.u32 %s617, 4
          %s630 = int_to_ptr.vmem [resolvable:$true] %s629
          %635 = dma.vmem_to_hbm [thread:$0]  %s630, 256, %s628, %s614, 128, 256, 8
        $region97: #{tpu_custom_call.1} parent=76 // pred_fallthru
          _
      $region77: #{tpu_custom_call.1} parent=5 // pred_fallthru
        _
      %p636 = scmp.le.s32.totalorder 2, %s20
      // Predicated region
      $region98: #{tpu_custom_call.1} parent=5 // pred_check
        %p637 = pneg %p636
      $region99: #{tpu_custom_call.1} parent=5 // pred_check_branch
        %639 = sbr.rel (%p637) target = $region101
      $region100: #{tpu_custom_call.1} parent=5 // pred_region
        %s640 = ssub.s32 %s20, 2
        // Predicated region
        $region102: #{tpu_custom_call.1} parent=100 // pred_check
          %p641 = pneg %p204
        $region103: #{tpu_custom_call.1} parent=100 // pred_check_branch
          %643 = sbr.rel (%p641) target = $region105
        $region104: #{tpu_custom_call.1} parent=100 // pred_region
          %s644 = sand.u32 %s189, 1
          %s645 = scalar_lea.sflag [#allocation4], %s644
          %s646 = sand.u32 %s189, 1
          %s647 = smul.addr %s646, 16
          %s648 = scalar_lea.vmem [#allocation8], %s647
          %649 = dma.done %s645, 256
        $region105: #{tpu_custom_call.1} parent=100 // pred_fallthru
          _
      $region101: #{tpu_custom_call.1} parent=5 // pred_fallthru
        _
    $region6: #{tpu_custom_call.1} parent=1 // loop_footer
      %s24 = sadd.s32 1, %s20
    $region7: #{tpu_custom_call.1} parent=1 // loop_footer_branch
      %19 = sbr.rel target = $region3
    $region8: #{tpu_custom_call.1} parent=1 // loop_exit
      _
    %650 = vsyncpa [#allocation3], 1
    %s651 = scalar_lea.sflag [#allocation3], 1
    %652 = vsyncpa %s651, 1
    %653 = vsyncpa [#allocation6], 1
    %s654 = scalar_lea.sflag [#allocation6], 1
    %655 = vsyncpa %s654, 1
    %656 = vsyncpa [#allocation4], 1
    %s657 = scalar_lea.sflag [#allocation4], 1
    %658 = vsyncpa %s657, 1

</llo_original>
